<compile_context>
chip_gen: v5e
topology: v5e:2x2
jax: 0.10.0
libtpu: 0.0.40
codegen_flags: <defaults>
</compile_context>

<pallas_src>
import math
import functools
import jax
import jax.numpy as jnp
from jax.experimental import pallas as pl
from jax.experimental.pallas import tpu as pltpu

LANE = 128  # lane width (last dim of a vreg)


def _round_up(n, m):
    return ((n + m - 1) // m) * m


def _dqn_kernel(x_ref, w1_ref, b1_ref, w2_ref, b2_ref, w3_ref, b3_ref, o_ref):
    # x_ref: (TB, in_states) f32; w*: bf16 (fan_in, fan_out_pad); b*: f32 (1, fan_out_pad)
    # Matmuls on the MXU with bf16 operands + f32 accumulation; bias/ReLU in f32 on the VPU.
    bf16 = jnp.bfloat16
    # In-kernel f32->bf16 cast (VPU has huge slack under the DMA/MXU); avoids a
    # separate XLA pad/cast pass over the input in HBM.
    x = x_ref[...].astype(bf16)
    h1 = jnp.dot(x, w1_ref[...], preferred_element_type=jnp.float32) + b1_ref[...]
    h1 = jnp.maximum(h1, 0.0)
    h2 = jnp.dot(h1.astype(bf16), w2_ref[...], preferred_element_type=jnp.float32) + b2_ref[...]
    h2 = jnp.maximum(h2, 0.0)
    out = jnp.dot(h2.astype(bf16), w3_ref[...], preferred_element_type=jnp.float32) + b3_ref[...]
    # Only the first out_actions lanes are real Q-values; store just those so the
    # HBM writeback is the exact (B, out_actions) array (no padded-lane traffic).
    o_ref[...] = out[:, : o_ref.shape[1]].astype(o_ref.dtype)


def init_dqn_params(key, in_states, h1_nodes, h2_nodes, out_actions=4):
    """Deterministic init mimicking PyTorch nn.Linear: U(-1/sqrt(fan_in), 1/sqrt(fan_in)).
    Weights stored as (fan_in, fan_out) (transposed vs nn.Linear), biases as (1, fan_out)."""
    ks = jax.random.split(key, 6)

    def linear(kw, kb, fan_in, fan_out):
        bound = 1.0 / math.sqrt(fan_in)
        w = jax.random.uniform(kw, (fan_in, fan_out), jnp.float32, -bound, bound)
        b = jax.random.uniform(kb, (1, fan_out), jnp.float32, -bound, bound)
        return w, b

    w1, b1 = linear(ks[0], ks[1], in_states, h1_nodes)
    w2, b2 = linear(ks[2], ks[3], h1_nodes, h2_nodes)
    w3, b3 = linear(ks[4], ks[5], h2_nodes, out_actions)
    return {"w1": w1, "b1": b1, "w2": w2, "b2": b2, "w3": w3, "b3": b3}


def prepare_padded_params(params):
    """Weights -> bf16 MXU operands; fan_out dims (and matching fan_in of the next
    layer) are zero-padded to 128 lanes. w1's fan_in (= in_states) is NOT padded,
    so the input activations are read from HBM at their natural width.
    Zero padding is exact: padded hidden columns are 0 and padded weight rows
    multiply those zeros."""
    def pad_w(w, pad_fan_in):
        r = _round_up(w.shape[0], LANE) if pad_fan_in else w.shape[0]
        c = _round_up(w.shape[1], LANE)
        return jnp.pad(w, ((0, r - w.shape[0]), (0, c - w.shape[1]))).astype(jnp.bfloat16)

    def pad_b(b):
        c = _round_up(b.shape[1], LANE)
        return jnp.pad(b, ((0, 0), (0, c - b.shape[1]))).astype(jnp.float32)

    return {"w1": pad_w(params["w1"], False), "b1": pad_b(params["b1"]),
            "w2": pad_w(params["w2"], True),  "b2": pad_b(params["b2"]),
            "w3": pad_w(params["w3"], True),  "b3": pad_b(params["b3"])}


def _batch_tiling(batch, tb):
    """Pick (tile_rows, grid_steps) for the batch axis.

    - tile_rows is a multiple of 16 (8 for tiny batches) so f32/bf16 sublane
      layouts stay clean.
    - For batch >= 32 we force >= 2 grid steps so the "parallel" batch axis
      actually shards across v7x's two TensorCores.
    - Tiles are sized by splitting the batch evenly, so the last (partial) tile
      wastes at most one sublane-granule of rows instead of up to a whole tile.
      Out-of-bounds rows of the last tile are handled by Pallas (padded reads,
      dropped writes) and never contaminate valid rows.
    """
    gran = 16 if batch >= 16 else 8
    n_tiles = max(1, -(-batch // tb))
    if batch >= 2 * gran:
        n_tiles = max(n_tiles, 2)
    tile = _round_up(-(-batch // n_tiles), gran)
    grid = -(-batch // tile)
    return tile, grid


@functools.partial(jax.jit, static_argnames=("out_actions", "tb"))
def dqn_forward(x, pparams, out_actions=4, tb=2048):
    """x: (B, in_states) float32. pparams: output of prepare_padded_params().
    Returns (B, out_actions) float32 Q-values."""
    w1, b1 = pparams["w1"], pparams["b1"]
    w2, b2 = pparams["w2"], pparams["b2"]
    w3, b3 = pparams["w3"], pparams["b3"]

    B, in_states = x.shape
    TB, grid = _batch_tiling(B, tb)

    # Weights/biases: whole-array blocks with constant index maps -> single DMA,
    # VMEM-resident across all grid steps (no re-fetch per batch tile).
    resident = lambda a: pl.BlockSpec(a.shape, lambda i: (0, 0))

    out = pl.pallas_call(
        _dqn_kernel,
        out_shape=jax.ShapeDtypeStruct((B, out_actions), jnp.float32),
        grid=(grid,),
        in_specs=[
            # Batch-tiled activations at their natural feature width (full last dim).
            pl.BlockSpec((TB, in_states), lambda i: (i, 0)),
            resident(w1), resident(b1),
            resident(w2), resident(b2),
            resident(w3), resident(b3),
        ],
        # Exact-width output block (last dim = full array dim -> contiguous DMA,
        # only useful bytes written back).
        out_specs=pl.BlockSpec((TB, out_actions), lambda i: (i, 0)),
        compiler_params=pltpu.CompilerParams(
            dimension_semantics=("parallel",),  # shard batch tiles across TCs on v7x
        ),
    )(x, w1, b1, w2, b2, w3, b3)
    return out


if __name__ == "__main__":
    key = jax.random.PRNGKey(0)
    k_params, k_x, k_x2 = jax.random.split(key, 3)

    in_states, h1_nodes, h2_nodes, out_actions = 16, 32, 32, 4
    params = init_dqn_params(k_params, in_states, h1_nodes, h2_nodes, out_actions)
    pparams = prepare_padded_params(params)

    bf = jnp.bfloat16

    def ref_bf16(x):
        # Emulate the kernel's bf16-operand / f32-accumulate matmuls.
        h = jnp.maximum(jnp.dot(x.astype(bf), params["w1"].astype(bf),
                                preferred_element_type=jnp.float32) + params["b1"], 0.0)
        h = jnp.maximum(jnp.dot(h.astype(bf), params["w2"].astype(bf),
                                preferred_element_type=jnp.float32) + params["b2"], 0.0)
        return jnp.dot(h.astype(bf), params["w3"].astype(bf),
                       preferred_element_type=jnp.float32) + params["b3"]

    def ref_f32(x):
        h = jnp.maximum(x @ params["w1"] + params["b1"], 0.0)
        h = jnp.maximum(h @ params["w2"] + params["b2"], 0.0)
        return h @ params["w3"] + params["b3"]

    # Small demo batch: single exact tile.
    x = jax.random.normal(k_x, (8, in_states), dtype=jnp.float32)
    q = dqn_forward(x, pparams, out_actions=out_actions)
    jax.block_until_ready(q)
    assert q.shape == (8, out_actions)
    assert jnp.allclose(q, ref_bf16(x), atol=2e-3, rtol=2e-3)
    assert jnp.allclose(q, ref_f32(x), atol=5e-2, rtol=5e-2)

    # Batch that exercises the 2-step grid (v7x megacore split) and the
    # ragged last tile (40 rows -> two 32-row tiles, trailing rows dropped).
    x2 = jax.random.normal(k_x2, (40, in_states), dtype=jnp.float32)
    q2 = dqn_forward(x2, pparams, out_actions=out_actions)
    jax.block_until_ready(q2)
    assert q2.shape == (40, out_actions)
    assert jnp.allclose(q2, ref_bf16(x2), atol=2e-3, rtol=2e-3)
    assert jnp.allclose(q2, ref_f32(x2), atol=5e-2, rtol=5e-2)

    print("KERNEL_OK")
</pallas_src>

<mosaic_0001>
module attributes {stable_mosaic.version = 11 : i64} {
  func.func @_dqn_kernel(%arg0: i32, %arg1: memref<8x16xf32, #tpu.memory_space<vmem>>, %arg2: memref<16x128xbf16, #tpu.memory_space<vmem>>, %arg3: memref<1x128xf32, #tpu.memory_space<vmem>>, %arg4: memref<128x128xbf16, #tpu.memory_space<vmem>>, %arg5: memref<1x128xf32, #tpu.memory_space<vmem>>, %arg6: memref<128x128xbf16, #tpu.memory_space<vmem>>, %arg7: memref<1x128xf32, #tpu.memory_space<vmem>>, %arg8: memref<8x4xf32, #tpu.memory_space<vmem>>) attributes {dimension_semantics = [#tpu.dimension_semantics<parallel>], iteration_bounds = array<i64: 1>, scalar_prefetch = 0 : i64, scratch_operands = 0 : i64, tpu.core_type = #tpu.core_type<tc>, window_params = [{transform_indices = @transform_0, window_bounds = array<i64: 8, 16>}, {pipeline_mode = #tpu.pipeline_mode<synchronous>, transform_indices = @transform_1, window_bounds = array<i64: 16, 128>}, {pipeline_mode = #tpu.pipeline_mode<synchronous>, transform_indices = @transform_2, window_bounds = array<i64: 1, 128>}, {pipeline_mode = #tpu.pipeline_mode<synchronous>, transform_indices = @transform_3, window_bounds = array<i64: 128, 128>}, {pipeline_mode = #tpu.pipeline_mode<synchronous>, transform_indices = @transform_4, window_bounds = array<i64: 1, 128>}, {pipeline_mode = #tpu.pipeline_mode<synchronous>, transform_indices = @transform_5, window_bounds = array<i64: 128, 128>}, {pipeline_mode = #tpu.pipeline_mode<synchronous>, transform_indices = @transform_6, window_bounds = array<i64: 1, 128>}, {transform_indices = @transform_7, window_bounds = array<i64: 8, 4>}]} {
    %c0 = arith.constant 0 : index
    %c0_0 = arith.constant 0 : index
    %0 = vector.load %arg1[%c0, %c0_0] : memref<8x16xf32, #tpu.memory_space<vmem>>, vector<8x16xf32>
    %1 = arith.truncf %0 : vector<8x16xf32> to vector<8x16xbf16>
    %c0_1 = arith.constant 0 : index
    %c0_2 = arith.constant 0 : index
    %2 = vector.load %arg2[%c0_1, %c0_2] : memref<16x128xbf16, #tpu.memory_space<vmem>>, vector<16x128xbf16>
    %cst = arith.constant dense<0.000000e+00> : vector<8x128xf32>
    %3 = tpu.matmul %1, %2, %cst {dimension_numbers = #tpu.dot_dimension_numbers<[1], [0], [0], [1], [0, 0, 1, 1], [], []>} : vector<8x16xbf16>, vector<16x128xbf16>, vector<8x128xf32> -> vector<8x128xf32>
    %c0_3 = arith.constant 0 : index
    %c0_4 = arith.constant 0 : index
    %4 = vector.load %arg3[%c0_3, %c0_4] : memref<1x128xf32, #tpu.memory_space<vmem>>, vector<1x128xf32>
    %5 = vector.broadcast %4 : vector<1x128xf32> to vector<8x128xf32>
    %6 = arith.addf %3, %5 : vector<8x128xf32>
    %cst_5 = arith.constant 0.000000e+00 : f32
    %7 = vector.broadcast %cst_5 : f32 to vector<8x128xf32>
    %8 = arith.maximumf %6, %7 : vector<8x128xf32>
    %9 = arith.truncf %8 : vector<8x128xf32> to vector<8x128xbf16>
    %c0_6 = arith.constant 0 : index
    %c0_7 = arith.constant 0 : index
    %10 = vector.load %arg4[%c0_6, %c0_7] : memref<128x128xbf16, #tpu.memory_space<vmem>>, vector<128x128xbf16>
    %cst_8 = arith.constant dense<0.000000e+00> : vector<8x128xf32>
    %11 = tpu.matmul %9, %10, %cst_8 {dimension_numbers = #tpu.dot_dimension_numbers<[1], [0], [0], [1], [0, 0, 1, 1], [], []>} : vector<8x128xbf16>, vector<128x128xbf16>, vector<8x128xf32> -> vector<8x128xf32>
    %c0_9 = arith.constant 0 : index
    %c0_10 = arith.constant 0 : index
    %12 = vector.load %arg5[%c0_9, %c0_10] : memref<1x128xf32, #tpu.memory_space<vmem>>, vector<1x128xf32>
    %13 = vector.broadcast %12 : vector<1x128xf32> to vector<8x128xf32>
    %14 = arith.addf %11, %13 : vector<8x128xf32>
    %cst_11 = arith.constant 0.000000e+00 : f32
    %15 = vector.broadcast %cst_11 : f32 to vector<8x128xf32>
    %16 = arith.maximumf %14, %15 : vector<8x128xf32>
    %17 = arith.truncf %16 : vector<8x128xf32> to vector<8x128xbf16>
    %c0_12 = arith.constant 0 : index
    %c0_13 = arith.constant 0 : index
    %18 = vector.load %arg6[%c0_12, %c0_13] : memref<128x128xbf16, #tpu.memory_space<vmem>>, vector<128x128xbf16>
    %cst_14 = arith.constant dense<0.000000e+00> : vector<8x128xf32>
    %19 = tpu.matmul %17, %18, %cst_14 {dimension_numbers = #tpu.dot_dimension_numbers<[1], [0], [0], [1], [0, 0, 1, 1], [], []>} : vector<8x128xbf16>, vector<128x128xbf16>, vector<8x128xf32> -> vector<8x128xf32>
    %c0_15 = arith.constant 0 : index
    %c0_16 = arith.constant 0 : index
    %20 = vector.load %arg7[%c0_15, %c0_16] : memref<1x128xf32, #tpu.memory_space<vmem>>, vector<1x128xf32>
    %21 = vector.broadcast %20 : vector<1x128xf32> to vector<8x128xf32>
    %22 = arith.addf %19, %21 : vector<8x128xf32>
    %23 = vector.extract_strided_slice %22 {offsets = [0, 0], sizes = [8, 4], strides = [1, 1]} : vector<8x128xf32> to vector<8x4xf32>
    %c0_17 = arith.constant 0 : index
    %c0_18 = arith.constant 0 : index
    %24 = vector.load %arg8[%c0_17, %c0_18] : memref<8x4xf32, #tpu.memory_space<vmem>>, vector<8x4xf32>
    tpu.vector_store %arg8[%c0_17, %c0_18], %23 {strides = array<i32>} : memref<8x4xf32, #tpu.memory_space<vmem>>, vector<8x4xf32>,
    return
  }
  func.func @transform_0(%arg0: i32) -> (i32, i32) {
    %c0_i32 = arith.constant 0 : i32
    %c0_i32_0 = arith.constant 0 : i32
    return %arg0, %c0_i32 : i32, i32
  }
  func.func @transform_1(%arg0: i32) -> (i32, i32) {
    %c0_i32 = arith.constant 0 : i32
    %c0_i32_0 = arith.constant 0 : i32
    %c0_i32_1 = arith.constant 0 : i32
    return %c0_i32, %c0_i32_0 : i32, i32
  }
  func.func @transform_2(%arg0: i32) -> (i32, i32) {
    %c0_i32 = arith.constant 0 : i32
    %c0_i32_0 = arith.constant 0 : i32
    %c0_i32_1 = arith.constant 0 : i32
    return %c0_i32, %c0_i32_0 : i32, i32
  }
  func.func @transform_3(%arg0: i32) -> (i32, i32) {
    %c0_i32 = arith.constant 0 : i32
    %c0_i32_0 = arith.constant 0 : i32
    %c0_i32_1 = arith.constant 0 : i32
    return %c0_i32, %c0_i32_0 : i32, i32
  }
  func.func @transform_4(%arg0: i32) -> (i32, i32) {
    %c0_i32 = arith.constant 0 : i32
    %c0_i32_0 = arith.constant 0 : i32
    %c0_i32_1 = arith.constant 0 : i32
    return %c0_i32, %c0_i32_0 : i32, i32
  }
  func.func @transform_5(%arg0: i32) -> (i32, i32) {
    %c0_i32 = arith.constant 0 : i32
    %c0_i32_0 = arith.constant 0 : i32
    %c0_i32_1 = arith.constant 0 : i32
    return %c0_i32, %c0_i32_0 : i32, i32
  }
  func.func @transform_6(%arg0: i32) -> (i32, i32) {
    %c0_i32 = arith.constant 0 : i32
    %c0_i32_0 = arith.constant 0 : i32
    %c0_i32_1 = arith.constant 0 : i32
    return %c0_i32, %c0_i32_0 : i32, i32
  }
  func.func @transform_7(%arg0: i32) -> (i32, i32) {
    %c0_i32 = arith.constant 0 : i32
    %c0_i32_0 = arith.constant 0 : i32
    return %arg0, %c0_i32 : i32, i32
  }
}

</mosaic_0001>

<llo_original>
// kernel: dqn_forward.1
$region0: #{dqn_forward.1}
  #allocation0 [shape = 'u32[]', space=smem, size = 0x4, offset = 0x4, fixed_abs, tag = 'smem constant byte address 0x4 - core index']
  #allocation1 [shape = 'u32[72,128]{1,0:T(1,128)}', space=vmem, size = 0x9000, scoped, tag = 'internal scratch']
  %s0 = inlined_call_operand.hbm [shape: f32[8,16], index: 0, kind: input, shape index: {}]
  %s1 = inlined_call_operand.hbm [shape: bf16[16,128], index: 1, kind: input, shape index: {}]
  %s2 = inlined_call_operand.hbm [shape: f32[1,128], index: 2, kind: input, shape index: {}]
  %s3 = inlined_call_operand.hbm [shape: bf16[128,128], index: 3, kind: input, shape index: {}]
  %s4 = inlined_call_operand.vmem [shape: f32[1,128], index: 4, kind: input, shape index: {}]
  %s5 = inlined_call_operand.hbm [shape: bf16[128,128], index: 5, kind: input, shape index: {}]
  %s6 = inlined_call_operand.vmem [shape: f32[1,128], index: 6, kind: input, shape index: {}]
  %s7 = inlined_call_operand.vmem [shape: f32[8,4], index: 7, kind: output, shape index: {}]
  %s8 = sld [smem:[#allocation0]]
  $region58: #{dqn_forward.1} parent=0
    _
  %s10 = ssub.s32 1, %s8
  %s11 = scalar_select 0, %s10, %s8
  $region1: #{dqn_forward.1} parent=0
    #allocation2 [shape = 'u8[4096]{0}', space=vmem, size = 0x1000, scoped, tag = 'input window, operand 0, single buffered']
    #allocation3 [shape = 's32[1]{0}', space=sflag, size = 0x4, scoped, tag = 'scoped memory for dqn_forward.1']
    #allocation4 [shape = 'u8[4096]{0}', space=vmem, size = 0x1000, scoped, tag = 'input window, operand 1, single buffered']
    #allocation5 [shape = 's32[1]{0}', space=sflag, size = 0x4, scoped, tag = 'scoped memory for dqn_forward.1']
    #allocation6 [shape = 'u8[512]{0}', space=vmem, size = 0x400, scoped, tag = 'input window, operand 2, single buffered']
    #allocation7 [shape = 'u8[32768]{0}', space=vmem, size = 0x8000, scoped, tag = 'input window, operand 3, single buffered']
    #allocation8 [shape = 's32[1]{0}', space=sflag, size = 0x4, scoped, tag = 'scoped memory for dqn_forward.1']
    #allocation9 [shape = 'u8[32768]{0}', space=vmem, size = 0x8000, scoped, tag = 'input window, operand 5, single buffered']
    %12 = vsyncpa [#allocation3], 0
    %13 = vsyncpa [#allocation5], 0
    %14 = vsyncpa [#allocation8], 0
    // Predicated region
    $region2: #{dqn_forward.1} parent=1 // pred_check
      _
    $region3: #{dqn_forward.1} parent=1 // pred_check_branch
      %16 = sbr.rel (0) target = $region5
    $region4: #{dqn_forward.1} parent=1 // pred_region
      %18 = vsyncadd [#allocation3], 0
      %s20 = sshll.u32 %s0, 4
      %s21 = int_to_ptr.hbm [resolvable:$true] %s20
      %s22 = sshll.u32 [#allocation2], 4
      %s23 = int_to_ptr.vmem [resolvable:$true] %s22
      %25 = dma.hbm_to_vmem [thread:$0]  %s21, 128, %s23, [#allocation3]
    $region5: #{dqn_forward.1} parent=1 // pred_fallthru
      _
    // Predicated region
    $region6: #{dqn_forward.1} parent=1 // pred_check
      _
    $region7: #{dqn_forward.1} parent=1 // pred_check_branch
      %27 = sbr.rel (0) target = $region9
    $region8: #{dqn_forward.1} parent=1 // pred_region
      %29 = vsyncadd [#allocation5], 0
      %s30 = sshll.u32 %s1, 4
      %s31 = int_to_ptr.hbm [resolvable:$true] %s30
      %s32 = sshll.u32 [#allocation4], 4
      %s33 = int_to_ptr.vmem [resolvable:$true] %s32
      %38 = dma.hbm_to_vmem [thread:$0]  %s31, 128, %s33, [#allocation5], 64, 64, 4
    $region9: #{dqn_forward.1} parent=1 // pred_fallthru
      _
    // Predicated region
    $region10: #{dqn_forward.1} parent=1 // pred_check
      _
    $region11: #{dqn_forward.1} parent=1 // pred_check_branch
      %40 = sbr.rel (0) target = $region13
    $region12: #{dqn_forward.1} parent=1 // pred_region
      %42 = vsyncadd [#allocation5], 0
      %s44 = sshll.u32 %s2, 4
      %s45 = int_to_ptr.hbm [resolvable:$true] %s44
      %s46 = sshll.u32 [#allocation6], 4
      %s47 = int_to_ptr.vmem [resolvable:$true] %s46
      %49 = dma.hbm_to_vmem [thread:$0]  %s45, 16, %s47, [#allocation5]
    $region13: #{dqn_forward.1} parent=1 // pred_fallthru
      _
    // Predicated region
    $region14: #{dqn_forward.1} parent=1 // pred_check
      _
    $region15: #{dqn_forward.1} parent=1 // pred_check_branch
      %51 = sbr.rel (0) target = $region17
    $region16: #{dqn_forward.1} parent=1 // pred_region
      %53 = vsyncadd [#allocation8], 0
      %s54 = sshll.u32 %s3, 4
      %s55 = int_to_ptr.hbm [resolvable:$true] %s54
      %s56 = sshll.u32 [#allocation7], 4
      %s57 = int_to_ptr.vmem [resolvable:$true] %s56
      %62 = dma.hbm_to_vmem [thread:$0]  %s55, 1024, %s57, [#allocation8], 64, 64, 4
    $region17: #{dqn_forward.1} parent=1 // pred_fallthru
      _
    // Predicated region
    $region18: #{dqn_forward.1} parent=1 // pred_check
      _
    $region19: #{dqn_forward.1} parent=1 // pred_check_branch
      %64 = sbr.rel (0) target = $region21
    $region20: #{dqn_forward.1} parent=1 // pred_region
      _
    $region21: #{dqn_forward.1} parent=1 // pred_fallthru
      _
    // Predicated region
    $region22: #{dqn_forward.1} parent=1 // pred_check
      _
    $region23: #{dqn_forward.1} parent=1 // pred_check_branch
      %66 = sbr.rel (0) target = $region25
    $region24: #{dqn_forward.1} parent=1 // pred_region
      %68 = vsyncadd [#allocation8], 0
      %s69 = sshll.u32 %s5, 4
      %s70 = int_to_ptr.hbm [resolvable:$true] %s69
      %s71 = sshll.u32 [#allocation9], 4
      %s72 = int_to_ptr.vmem [resolvable:$true] %s71
      %77 = dma.hbm_to_vmem [thread:$0]  %s70, 1024, %s72, [#allocation8], 64, 64, 4
    $region25: #{dqn_forward.1} parent=1 // pred_fallthru
      _
    // Predicated region
    $region26: #{dqn_forward.1} parent=1 // pred_check
      _
    $region27: #{dqn_forward.1} parent=1 // pred_check_branch
      %79 = sbr.rel (0) target = $region29
    $region28: #{dqn_forward.1} parent=1 // pred_region
      _
    $region29: #{dqn_forward.1} parent=1 // pred_fallthru
      _
    // Predicated region
    $region30: #{dqn_forward.1} parent=1 // pred_check
      _
    $region31: #{dqn_forward.1} parent=1 // pred_check_branch
      %81 = sbr.rel (0) target = $region33
    $region32: #{dqn_forward.1} parent=1 // pred_region
      %83 = dma.done [#allocation3], 128
    $region33: #{dqn_forward.1} parent=1 // pred_fallthru
      _
    // Predicated region
    $region34: #{dqn_forward.1} parent=1 // pred_check
      _
    $region35: #{dqn_forward.1} parent=1 // pred_check_branch
      %85 = sbr.rel (0) target = $region37
    $region36: #{dqn_forward.1} parent=1 // pred_region
      %87 = dma.done [#allocation5], 128
    $region37: #{dqn_forward.1} parent=1 // pred_fallthru
      _
    // Predicated region
    $region38: #{dqn_forward.1} parent=1 // pred_check
      _
    $region39: #{dqn_forward.1} parent=1 // pred_check_branch
      %89 = sbr.rel (0) target = $region41
    $region40: #{dqn_forward.1} parent=1 // pred_region
      %91 = dma.done [#allocation5], 16
    $region41: #{dqn_forward.1} parent=1 // pred_fallthru
      _
    // Predicated region
    $region42: #{dqn_forward.1} parent=1 // pred_check
      _
    $region43: #{dqn_forward.1} parent=1 // pred_check_branch
      %93 = sbr.rel (0) target = $region45
    $region44: #{dqn_forward.1} parent=1 // pred_region
      %95 = dma.done [#allocation8], 1024
    $region45: #{dqn_forward.1} parent=1 // pred_fallthru
      _
    // Predicated region
    $region46: #{dqn_forward.1} parent=1 // pred_check
      _
    $region47: #{dqn_forward.1} parent=1 // pred_check_branch
      %97 = sbr.rel (0) target = $region49
    $region48: #{dqn_forward.1} parent=1 // pred_region
      %99 = dma.done [#allocation8], 1024
    $region49: #{dqn_forward.1} parent=1 // pred_fallthru
      _
    %v101 = vld [vmem:[#allocation2] sm:$0xff]
    %v102 = vpack.c.bf16 %v101, %v101
    %v103 = vld [vmem:[#allocation4] sm:$0xf]
    %v104 = vld [vmem:[#allocation4 + $0x4] sm:$0xf]
    %v105 = vld [vmem:[#allocation6] sm:$0x1]
    %v107 = vperm.slane %v105, 0
    %v111 = vunpack.c.l.b16 %v103
    %v112 = vunpack.c.l.b16 %v104
    %v113 = vpack.c.b16 %v112, %v111
    %vm115 = vcmask 130048
    %v117 = vsel %vm115, %v102, 0
    %119 = vmatpush.bf16.msra.mxu0 0
    %120 = vmatpush.bf16.msra.mxu0 0
    %121 = vmatpush.bf16.msra.mxu0 0
    %122 = vmatpush.bf16.msra.mxu0 0
    %123 = vmatpush.bf16.msra.mxu0 0
    %124 = vmatpush.bf16.msra.mxu0 0
    %125 = vmatpush.bf16.msra.mxu0 0
    %126 = vmatpush.bf16.msra.mxu0 %v113
    %127 = vmatmul.bf16.gmra.mxu0 %v117
    %v128 = vpop.f32.mrf.mxu0
    %v129 = vadd.f32 %v107, %v128
    %v130 = vpop.f32.mrf.mxu0
    %131 = vdwg.mxu0
    %v132 = vmax.f32 %v129, 0.0
    %v133 = vpack.c.bf16 %v132, %v132
    %v134 = vld [vmem:[#allocation7] sm:$0xf]
    %v135 = vld [vmem:[#allocation7 + $0x4] sm:$0xf]
    %v136 = vld [vmem:[#allocation7 + $0x8] sm:$0xf]
    %v137 = vld [vmem:[#allocation7 + $0xc] sm:$0xf]
    %v138 = vld [vmem:[#allocation7 + $0x10] sm:$0xf]
    %v139 = vld [vmem:[#allocation7 + $0x14] sm:$0xf]
    %v140 = vld [vmem:[#allocation7 + $0x18] sm:$0xf]
    %v141 = vld [vmem:[#allocation7 + $0x1c] sm:$0xf]
    %v142 = vld [vmem:[#allocation7 + $0x20] sm:$0xf]
    %v143 = vld [vmem:[#allocation7 + $0x24] sm:$0xf]
    %v144 = vld [vmem:[#allocation7 + $0x28] sm:$0xf]
    %v145 = vld [vmem:[#allocation7 + $0x2c] sm:$0xf]
    %v146 = vld [vmem:[#allocation7 + $0x30] sm:$0xf]
    %v147 = vld [vmem:[#allocation7 + $0x34] sm:$0xf]
    %v148 = vld [vmem:[#allocation7 + $0x38] sm:$0xf]
    %v149 = vld [vmem:[#allocation7 + $0x3c] sm:$0xf]
    %v150 = vld [vmem:[%s4] sm:$0x1]
    %v152 = vperm.slane %v150, 0
    %v170 = vunpack.c.l.b16 %v134
    %v171 = vunpack.c.l.b16 %v135
    %v172 = vunpack.c.l.b16 %v136
    %v173 = vunpack.c.l.b16 %v137
    %v174 = vunpack.c.l.b16 %v138
    %v175 = vunpack.c.l.b16 %v139
    %v176 = vunpack.c.l.b16 %v140
    %v177 = vunpack.c.l.b16 %v141
    %v178 = vunpack.c.l.b16 %v142
    %v179 = vunpack.c.l.b16 %v143
    %v180 = vunpack.c.l.b16 %v144
    %v181 = vunpack.c.l.b16 %v145
    %v182 = vunpack.c.l.b16 %v146
    %v183 = vunpack.c.l.b16 %v147
    %v184 = vunpack.c.l.b16 %v148
    %v185 = vunpack.c.l.b16 %v149
    %v186 = vpack.c.b16 %v171, %v170
    %v187 = vpack.c.b16 %v173, %v172
    %v188 = vpack.c.b16 %v175, %v174
    %v189 = vpack.c.b16 %v177, %v176
    %v190 = vpack.c.b16 %v179, %v178
    %v191 = vpack.c.b16 %v181, %v180
    %v192 = vpack.c.b16 %v183, %v182
    %v193 = vpack.c.b16 %v185, %v184
    %202 = vmatpush.bf16.msra.mxu0 %v193
    %203 = vmatpush.bf16.msra.mxu0 %v192
    %204 = vmatpush.bf16.msra.mxu0 %v191
    %205 = vmatpush.bf16.msra.mxu0 %v190
    %206 = vmatpush.bf16.msra.mxu0 %v189
    %207 = vmatpush.bf16.msra.mxu0 %v188
    %208 = vmatpush.bf16.msra.mxu0 %v187
    %209 = vmatpush.bf16.msra.mxu0 %v186
    %210 = vmatmul.bf16.gmra.mxu0 %v133
    %v211 = vpop.f32.mrf.mxu0
    %v212 = vadd.f32 %v152, %v211
    %v213 = vpop.f32.mrf.mxu0
    %214 = vdwg.mxu0
    %v215 = vmax.f32 %v212, 0.0
    %v216 = vpack.c.bf16 %v215, %v215
    %v217 = vld [vmem:[#allocation9] sm:$0xf]
    %v218 = vld [vmem:[#allocation9 + $0x4] sm:$0xf]
    %v219 = vld [vmem:[#allocation9 + $0x8] sm:$0xf]
    %v220 = vld [vmem:[#allocation9 + $0xc] sm:$0xf]
    %v221 = vld [vmem:[#allocation9 + $0x10] sm:$0xf]
    %v222 = vld [vmem:[#allocation9 + $0x14] sm:$0xf]
    %v223 = vld [vmem:[#allocation9 + $0x18] sm:$0xf]
    %v224 = vld [vmem:[#allocation9 + $0x1c] sm:$0xf]
    %v225 = vld [vmem:[#allocation9 + $0x20] sm:$0xf]
    %v226 = vld [vmem:[#allocation9 + $0x24] sm:$0xf]
    %v227 = vld [vmem:[#allocation9 + $0x28] sm:$0xf]
    %v228 = vld [vmem:[#allocation9 + $0x2c] sm:$0xf]
    %v229 = vld [vmem:[#allocation9 + $0x30] sm:$0xf]
    %v230 = vld [vmem:[#allocation9 + $0x34] sm:$0xf]
    %v231 = vld [vmem:[#allocation9 + $0x38] sm:$0xf]
    %v232 = vld [vmem:[#allocation9 + $0x3c] sm:$0xf]
    %v233 = vld [vmem:[%s6] sm:$0x1]
    %v235 = vperm.slane %v233, 0
    %v253 = vunpack.c.l.b16 %v217
    %v254 = vunpack.c.l.b16 %v218
    %v255 = vunpack.c.l.b16 %v219
    %v256 = vunpack.c.l.b16 %v220
    %v257 = vunpack.c.l.b16 %v221
    %v258 = vunpack.c.l.b16 %v222
    %v259 = vunpack.c.l.b16 %v223
    %v260 = vunpack.c.l.b16 %v224
    %v261 = vunpack.c.l.b16 %v225
    %v262 = vunpack.c.l.b16 %v226
    %v263 = vunpack.c.l.b16 %v227
    %v264 = vunpack.c.l.b16 %v228
    %v265 = vunpack.c.l.b16 %v229
    %v266 = vunpack.c.l.b16 %v230
    %v267 = vunpack.c.l.b16 %v231
    %v268 = vunpack.c.l.b16 %v232
    %v269 = vpack.c.b16 %v254, %v253
    %v270 = vpack.c.b16 %v256, %v255
    %v271 = vpack.c.b16 %v258, %v257
    %v272 = vpack.c.b16 %v260, %v259
    %v273 = vpack.c.b16 %v262, %v261
    %v274 = vpack.c.b16 %v264, %v263
    %v275 = vpack.c.b16 %v266, %v265
    %v276 = vpack.c.b16 %v268, %v267
    %285 = vmatpush.bf16.msra.mxu0 %v276
    %286 = vmatpush.bf16.msra.mxu0 %v275
    %287 = vmatpush.bf16.msra.mxu0 %v274
    %288 = vmatpush.bf16.msra.mxu0 %v273
    %289 = vmatpush.bf16.msra.mxu0 %v272
    %290 = vmatpush.bf16.msra.mxu0 %v271
    %291 = vmatpush.bf16.msra.mxu0 %v270
    %292 = vmatpush.bf16.msra.mxu0 %v269
    %293 = vmatmul.bf16.gmra.mxu0 %v216
    %v294 = vpop.f32.mrf.mxu0
    %v295 = vadd.f32 %v235, %v294
    %v296 = vpop.f32.mrf.mxu0
    %297 = vdwg.mxu0
    %vm298 = vcmask 31744
    %299 = vst.msk [vmem:[%s7] sm:$0xff] %vm298, %v295
    // Predicated region
    $region50: #{dqn_forward.1} parent=1 // pred_check
      _
    $region51: #{dqn_forward.1} parent=1 // pred_check_branch
      %301 = sbr.rel (0) target = $region53
    $region52: #{dqn_forward.1} parent=1 // pred_region
      _
    $region53: #{dqn_forward.1} parent=1 // pred_fallthru
      _
    // Predicated region
    $region54: #{dqn_forward.1} parent=1 // pred_check
      _
    $region55: #{dqn_forward.1} parent=1 // pred_check_branch
      %303 = sbr.rel (0) target = $region57
    $region56: #{dqn_forward.1} parent=1 // pred_region
      _
    $region57: #{dqn_forward.1} parent=1 // pred_fallthru
      _
    %304 = vsyncpa [#allocation3], 1
    %305 = vsyncpa [#allocation5], 1
    %306 = vsyncpa [#allocation8], 1

</llo_original>
